<compile_context>
chip_gen: v7x
topology: tpu7x:2x2x1
jax: 0.10.0
libtpu: 0.0.40
codegen_flags: <defaults>
</compile_context>

<pallas_src>
import math

import jax
import jax.numpy as jnp
import numpy as np
from jax.experimental import pallas as pl
from jax.experimental.pallas import tpu as pltpu


def positional_encoding(length: int, d_model: int = 64, max_tile_rows: int = 1024):
    """Returns the (1, length, d_model) float32 sinusoidal positional encoding."""
    assert d_model % 2 == 0, "d_model must be even (matches PyTorch's pe[:,1::2] slicing)"
    assert length * d_model % 128 == 0, "length * d_model must be a multiple of 128"
    # f32 represents integer positions exactly only up to 2**24.
    assert length <= (1 << 24), "positions beyond 2^24 lose exactness in float32"

    total_rows = (length * d_model) // 128          # rows of the lane-dense slab

    # Rows after which the (local position, column) pattern repeats AND a tile
    # boundary lands exactly on a position boundary.
    period = d_model // math.gcd(d_model, 128)
    assert total_rows % period == 0

    # Largest tile_rows <= max_tile_rows that divides total_rows, respects the
    # pattern period and the (8, 128) block constraint.
    tile_rows = None
    for t in range(min(total_rows, max_tile_rows), 0, -1):
        if total_rows % t == 0 and t % period == 0 and (t % 8 == 0 or t == total_rows):
            tile_rows = t
            break
    assert tile_rows is not None

    pos_per_tile = tile_rows * 128 // d_model       # positions covered per tile
    grid = (total_rows // tile_rows,)

    # ---- host-precomputed per-tile patterns (same for every grid step) ------
    flat = np.arange(tile_rows * 128, dtype=np.int64)
    j = flat % d_model                               # feature column index
    pos_local = (flat // d_model).astype(np.float32).reshape(tile_rows, 128)
    div_term = np.exp(
        np.arange(0, d_model, 2, dtype=np.float32) * -(math.log(10000.0) / d_model)
    ).astype(np.float32)
    freq = div_term[j // 2].reshape(tile_rows, 128)                  # pos multiplier
    phase = ((j % 2).astype(np.float32) * np.float32(math.pi / 2)    # 0 -> sin, pi/2 -> cos
             ).reshape(tile_rows, 128)

    # ---- kernel: one fused mul-add + one sin per element --------------------
    def _pe_kernel(pos_ref, freq_ref, phase_ref, o_ref):
        base = (pl.program_id(0) * pos_per_tile).astype(jnp.float32)
        pos = base + pos_ref[...]                    # exact integer positions in f32
        o_ref[...] = jnp.sin(pos * freq_ref[...] + phase_ref[...])

    pattern_spec = pl.BlockSpec((tile_rows, 128), lambda i: (0, 0))

    out2d = pl.pallas_call(
        _pe_kernel,
        out_shape=jax.ShapeDtypeStruct((total_rows, 128), jnp.float32),
        grid_spec=pltpu.PrefetchScalarGridSpec(
            num_scalar_prefetch=0,
            grid=grid,
            in_specs=[pattern_spec, pattern_spec, pattern_spec],
            out_specs=pl.BlockSpec((tile_rows, 128), lambda i: (i, 0)),
        ),
        compiler_params=pltpu.CompilerParams(
            dimension_semantics=("parallel",),       # independent writes -> 2 TCs on v7x
        ),
    )(jnp.asarray(pos_local), jnp.asarray(freq), jnp.asarray(phase))

    # Contiguous reshape back to the PyTorch layout (1, length, d_model).
    return out2d.reshape(1, length, d_model)


def _reference_pe(length: int, d_model: int) -> np.ndarray:
    """NumPy port of the PyTorch buffer construction, for verification."""
    pe = np.zeros((length, d_model), dtype=np.float32)
    position = np.arange(0, length, dtype=np.float32)[:, None]
    div_term = np.exp(
        np.arange(0, d_model, 2, dtype=np.float32) * -(math.log(10000.0) / d_model)
    )
    pe[:, 0::2] = np.sin(position * div_term)
    pe[:, 1::2] = np.cos(position * div_term)
    return pe[None]


if __name__ == "__main__":
    # The module's forward takes only `length` (no tensor inputs); the PRNG key
    # is created only for API parity with the harness and is unused.
    _ = jax.random.PRNGKey(0)

    length = 128
    d_model = 64
    ref = _reference_pe(length, d_model)

    # Default (single large tile at this small size).
    out = jax.block_until_ready(positional_encoding(length, d_model=d_model))
    assert out.shape == (1, length, d_model)
    assert out.dtype == jnp.float32
    np.testing.assert_allclose(np.asarray(out), ref, atol=1e-4, rtol=1e-5)

    # Force a multi-step grid to exercise the tiled/base-position path.
    out_tiled = jax.block_until_ready(
        positional_encoding(length, d_model=d_model, max_tile_rows=16)
    )
    np.testing.assert_allclose(np.asarray(out_tiled), ref, atol=1e-4, rtol=1e-5)

    print("KERNEL_OK")
</pallas_src>

<mosaic_0001>
module attributes {stable_mosaic.version = 11 : i64} {
  func.func @_pe_kernel(%arg0: i32, %arg1: memref<64x128xf32, #tpu.memory_space<vmem>>, %arg2: memref<64x128xf32, #tpu.memory_space<vmem>>, %arg3: memref<64x128xf32, #tpu.memory_space<vmem>>, %arg4: memref<64x128xf32, #tpu.memory_space<vmem>>) attributes {dimension_semantics = [#tpu.dimension_semantics<parallel>], iteration_bounds = array<i64: 1>, scalar_prefetch = 0 : i64, scratch_operands = 0 : i64, tpu.core_type = #tpu.core_type<tc>, window_params = [{pipeline_mode = #tpu.pipeline_mode<synchronous>, transform_indices = @transform_0, window_bounds = array<i64: 64, 128>}, {pipeline_mode = #tpu.pipeline_mode<synchronous>, transform_indices = @transform_1, window_bounds = array<i64: 64, 128>}, {pipeline_mode = #tpu.pipeline_mode<synchronous>, transform_indices = @transform_2, window_bounds = array<i64: 64, 128>}, {transform_indices = @transform_3, window_bounds = array<i64: 64, 128>}]} {
    %c128_i32 = arith.constant 128 : i32
    %0 = arith.muli %arg0, %c128_i32 : i32
    %1 = arith.sitofp %0 : i32 to f32
    %c0 = arith.constant 0 : index
    %c0_0 = arith.constant 0 : index
    %2 = vector.load %arg1[%c0, %c0_0] : memref<64x128xf32, #tpu.memory_space<vmem>>, vector<64x128xf32>
    %3 = vector.broadcast %1 : f32 to vector<64x128xf32>
    %4 = arith.addf %3, %2 : vector<64x128xf32>
    %c0_1 = arith.constant 0 : index
    %c0_2 = arith.constant 0 : index
    %5 = vector.load %arg2[%c0_1, %c0_2] : memref<64x128xf32, #tpu.memory_space<vmem>>, vector<64x128xf32>
    %6 = arith.mulf %4, %5 : vector<64x128xf32>
    %c0_3 = arith.constant 0 : index
    %c0_4 = arith.constant 0 : index
    %7 = vector.load %arg3[%c0_3, %c0_4] : memref<64x128xf32, #tpu.memory_space<vmem>>, vector<64x128xf32>
    %8 = arith.addf %6, %7 : vector<64x128xf32>
    %9 = math.sin %8 : vector<64x128xf32>
    %c0_5 = arith.constant 0 : index
    %c0_6 = arith.constant 0 : index
    %10 = vector.load %arg4[%c0_5, %c0_6] : memref<64x128xf32, #tpu.memory_space<vmem>>, vector<64x128xf32>
    tpu.vector_store %arg4[%c0_5, %c0_6], %9 {strides = array<i32>} : memref<64x128xf32, #tpu.memory_space<vmem>>, vector<64x128xf32>,
    return
  }
  func.func @transform_0(%arg0: i32) -> (i32, i32) {
    %c0_i32 = arith.constant 0 : i32
    %c0_i32_0 = arith.constant 0 : i32
    %c0_i32_1 = arith.constant 0 : i32
    return %c0_i32, %c0_i32_0 : i32, i32
  }
  func.func @transform_1(%arg0: i32) -> (i32, i32) {
    %c0_i32 = arith.constant 0 : i32
    %c0_i32_0 = arith.constant 0 : i32
    %c0_i32_1 = arith.constant 0 : i32
    return %c0_i32, %c0_i32_0 : i32, i32
  }
  func.func @transform_2(%arg0: i32) -> (i32, i32) {
    %c0_i32 = arith.constant 0 : i32
    %c0_i32_0 = arith.constant 0 : i32
    %c0_i32_1 = arith.constant 0 : i32
    return %c0_i32, %c0_i32_0 : i32, i32
  }
  func.func @transform_3(%arg0: i32) -> (i32, i32) {
    %c0_i32 = arith.constant 0 : i32
    %c0_i32_0 = arith.constant 0 : i32
    return %arg0, %c0_i32 : i32, i32
  }
}

</mosaic_0001>

<llo_original>
// kernel: tpu_custom_call.1
$region0: #{tpu_custom_call.1}
  #allocation0 [shape = 'u32[]', space=smem, size = 0x4, offset = 0x4, fixed_abs, tag = 'smem constant byte address 0x4 - core index']
  #allocation1 [shape = 'u32[144,128]{1,0:T(1,128)}', space=vmem, size = 0x12000, scoped, tag = 'internal scratch']
  %s0 = inlined_call_operand.hbm [shape: f32[64,128], index: 0, kind: input, shape index: {}]
  %s1 = inlined_call_operand.hbm [shape: f32[64,128], index: 1, kind: input, shape index: {}]
  %s2 = inlined_call_operand.hbm [shape: f32[64,128], index: 2, kind: input, shape index: {}]
  %s3 = inlined_call_operand.hbm [shape: f32[64,128], index: 3, kind: output, shape index: {}]
  %s4 = sld [smem:[#allocation0]]
  $region34: #{tpu_custom_call.1} parent=0
    _
  %s6 = ssub.s32 1, %s4
  %s7 = scalar_select 0, %s6, %s4
  $region1: #{tpu_custom_call.1} parent=0
    #allocation2 [shape = 'u8[32768]{0}', space=vmem, size = 0x8000, scoped, tag = 'input window, operand 0, single buffered']
    #allocation3 [shape = 's32[1]{0}', space=sflag, size = 0x4, scoped, tag = 'scoped memory for tpu_custom_call.1']
    #allocation4 [shape = 's32[1]{0}', space=sflag, size = 0x4, scoped, tag = 'scoped memory for tpu_custom_call.1']
    #allocation5 [shape = 'u8[32768]{0}', space=vmem, size = 0x8000, scoped, tag = 'input window, operand 1, single buffered']
    #allocation6 [shape = 's32[1]{0}', space=sflag, size = 0x4, scoped, tag = 'scoped memory for tpu_custom_call.1']
    #allocation7 [shape = 'u8[32768]{0}', space=vmem, size = 0x8000, scoped, tag = 'input window, operand 2, single buffered']
    #allocation8 [shape = 'u8[32768]{0}', space=vmem, size = 0x8000, scoped, tag = 'output window, operand 0, single buffered']
    %8 = vsyncpa [#allocation3], 0
    %9 = vsyncpa [#allocation6], 0
    %10 = vsyncpa [#allocation4], 0
    // Predicated region
    $region2: #{tpu_custom_call.1} parent=1 // pred_check
      _
    $region3: #{tpu_custom_call.1} parent=1 // pred_check_branch
      %12 = sbr.rel (0) target = $region5
    $region4: #{tpu_custom_call.1} parent=1 // pred_region
      %s14 = ssub.s32 1024, 1024
      %15 = vsyncadd [#allocation3], %s14
      %s16 = sshll.u32 [#allocation2], 4
      %s17 = int_to_ptr.vmem [resolvable:$true] %s16
      %22 = dma.hbm_to_vmem [thread:$0]  %s0, 1024, %s17, [#allocation3], 128, 128, 8
    $region5: #{tpu_custom_call.1} parent=1 // pred_fallthru
      _
    // Predicated region
    $region6: #{tpu_custom_call.1} parent=1 // pred_check
      _
    $region7: #{tpu_custom_call.1} parent=1 // pred_check_branch
      %24 = sbr.rel (0) target = $region9
    $region8: #{tpu_custom_call.1} parent=1 // pred_region
      %s26 = ssub.s32 1024, 1024
      %27 = vsyncadd [#allocation6], %s26
      %s28 = sshll.u32 [#allocation5], 4
      %s29 = int_to_ptr.vmem [resolvable:$true] %s28
      %34 = dma.hbm_to_vmem [thread:$0]  %s1, 1024, %s29, [#allocation6], 128, 128, 8
    $region9: #{tpu_custom_call.1} parent=1 // pred_fallthru
      _
    // Predicated region
    $region10: #{tpu_custom_call.1} parent=1 // pred_check
      _
    $region11: #{tpu_custom_call.1} parent=1 // pred_check_branch
      %36 = sbr.rel (0) target = $region13
    $region12: #{tpu_custom_call.1} parent=1 // pred_region
      %s38 = ssub.s32 1024, 1024
      %39 = vsyncadd [#allocation6], %s38
      %s40 = sshll.u32 [#allocation7], 4
      %s41 = int_to_ptr.vmem [resolvable:$true] %s40
      %46 = dma.hbm_to_vmem [thread:$0]  %s2, 1024, %s41, [#allocation6], 128, 128, 8
    $region13: #{tpu_custom_call.1} parent=1 // pred_fallthru
      _
    // Predicated region
    $region14: #{tpu_custom_call.1} parent=1 // pred_check
      _
    $region15: #{tpu_custom_call.1} parent=1 // pred_check_branch
      %48 = sbr.rel (0) target = $region17
    $region16: #{tpu_custom_call.1} parent=1 // pred_region
      %49 = dma.done [#allocation3], 1024
    $region17: #{tpu_custom_call.1} parent=1 // pred_fallthru
      _
    // Predicated region
    $region18: #{tpu_custom_call.1} parent=1 // pred_check
      _
    $region19: #{tpu_custom_call.1} parent=1 // pred_check_branch
      %51 = sbr.rel (0) target = $region21
    $region20: #{tpu_custom_call.1} parent=1 // pred_region
      %52 = dma.done [#allocation6], 1024
    $region21: #{tpu_custom_call.1} parent=1 // pred_fallthru
      _
    // Predicated region
    $region22: #{tpu_custom_call.1} parent=1 // pred_check
      _
    $region23: #{tpu_custom_call.1} parent=1 // pred_check_branch
      %54 = sbr.rel (0) target = $region25
    $region24: #{tpu_custom_call.1} parent=1 // pred_region
      %55 = dma.done [#allocation6], 1024
    $region25: #{tpu_custom_call.1} parent=1 // pred_fallthru
      _
    %s56 = smul.u32 0, 128
    %s57 = scvt.s32.f32 %s56
    %v58 = vld [vmem:[#allocation2] sm:$0xff]
    %v59 = vld [vmem:[#allocation2 + $0x8] sm:$0xff]
    %v60 = vld [vmem:[#allocation2 + $0x10] sm:$0xff]
    %v61 = vld [vmem:[#allocation2 + $0x18] sm:$0xff]
    %v62 = vld [vmem:[#allocation2 + $0x20] sm:$0xff]
    %v63 = vld [vmem:[#allocation2 + $0x28] sm:$0xff]
    %v64 = vld [vmem:[#allocation2 + $0x30] sm:$0xff]
    %v65 = vld [vmem:[#allocation2 + $0x38] sm:$0xff]
    %v66 = vstv %s57
    %v67 = vadd.f32 %v66, %v58
    %v68 = vadd.f32 %v66, %v59
    %v69 = vadd.f32 %v66, %v60
    %v70 = vadd.f32 %v66, %v61
    %v71 = vadd.f32 %v66, %v62
    %v72 = vadd.f32 %v66, %v63
    %v73 = vadd.f32 %v66, %v64
    %v74 = vadd.f32 %v66, %v65
    %v75 = vld [vmem:[#allocation5] sm:$0xff]
    %v76 = vld [vmem:[#allocation5 + $0x8] sm:$0xff]
    %v77 = vld [vmem:[#allocation5 + $0x10] sm:$0xff]
    %v78 = vld [vmem:[#allocation5 + $0x18] sm:$0xff]
    %v79 = vld [vmem:[#allocation5 + $0x20] sm:$0xff]
    %v80 = vld [vmem:[#allocation5 + $0x28] sm:$0xff]
    %v81 = vld [vmem:[#allocation5 + $0x30] sm:$0xff]
    %v82 = vld [vmem:[#allocation5 + $0x38] sm:$0xff]
    %v83 = vmul.f32 %v67, %v75
    %v84 = vmul.f32 %v68, %v76
    %v85 = vmul.f32 %v69, %v77
    %v86 = vmul.f32 %v70, %v78
    %v87 = vmul.f32 %v71, %v79
    %v88 = vmul.f32 %v72, %v80
    %v89 = vmul.f32 %v73, %v81
    %v90 = vmul.f32 %v74, %v82
    %v91 = vld [vmem:[#allocation7] sm:$0xff]
    %v92 = vld [vmem:[#allocation7 + $0x8] sm:$0xff]
    %v93 = vld [vmem:[#allocation7 + $0x10] sm:$0xff]
    %v94 = vld [vmem:[#allocation7 + $0x18] sm:$0xff]
    %v95 = vld [vmem:[#allocation7 + $0x20] sm:$0xff]
    %v96 = vld [vmem:[#allocation7 + $0x28] sm:$0xff]
    %v97 = vld [vmem:[#allocation7 + $0x30] sm:$0xff]
    %v98 = vld [vmem:[#allocation7 + $0x38] sm:$0xff]
    %v99 = vadd.f32 %v83, %v91
    %v100 = vadd.f32 %v84, %v92
    %v101 = vadd.f32 %v85, %v93
    %v102 = vadd.f32 %v86, %v94
    %v103 = vadd.f32 %v87, %v95
    %v104 = vadd.f32 %v88, %v96
    %v105 = vadd.f32 %v89, %v97
    %v106 = vadd.f32 %v90, %v98
    %v107 = vand.u32 2147483647, %v99
    %vm108 = vcmp.le.f32.partialorder %v107, 0.7853982
    %vm109 = vcmp.lt.s32.totalorder %v99, 0
    %v110 = vand.u32 %v99, 2139095040
    %v111 = vshrl.u32 %v110, 23
    %v112 = vsub.s32 %v111, 127
    %v113 = vand.u32 2147483647, %v99
    %v114 = vand.u32 %v113, 8388607
    %v115 = vor.u32 %v114, 8388608
    %v116 = vsub.s32 0, %v115
    %v117 = vadd.s32 %v112, 1
    %vm118 = vcmp.gt.s32.totalorder %v117, 0
    %v119 = vsel %vm118, %v117, 0
    %v120 = vshrl.u32 %v119, 5
    %v121 = vand.u32 %v119, 31
    %v122 = vsub.s32 32, %v121
    %v123 = vshrl.u32 683565275, %v122
    %v124 = vshll.u32 683565275, %v121
    %v125 = vshrl.u32 2475754826, %v122
    %v126 = vor.u32 %v124, %v125
    %v127 = vshll.u32 2475754826, %v121
    %v128 = vshrl.u32 2131351028, %v122
    %v129 = vor.u32 %v127, %v128
    %v130 = vshll.u32 2131351028, %v121
    %v131 = vshrl.u32 2102212464, %v122
    %v132 = vor.u32 %v130, %v131
    %v133 = vshll.u32 2102212464, %v121
    %v134 = vshrl.u32 920167782, %v122
    %v135 = vor.u32 %v133, %v134
    %v136 = vshll.u32 920167782, %v121
    %v137 = vshrl.u32 1326507024, %v122
    %v138 = vor.u32 %v136, %v137
    %vm139 = vcmp.lt.s32.totalorder %v120, 1
    %vm140 = vcmp.lt.s32.totalorder %v120, 2
    %vm141 = vcmp.lt.s32.totalorder %v120, 3
    %vm142 = vcmp.lt.s32.totalorder %v120, 4
    %v143 = vsel %vm139, %v123, %v126
    %v144 = vsel %vm142, %v132, 2102212464
    %v145 = vsel %vm141, %v129, %v144
    %v146 = vsel %vm140, %v143, %v145
    %v147 = vsel %vm139, %v126, %v129
    %v148 = vsel %vm142, %v135, 920167782
    %v149 = vsel %vm141, %v132, %v148
    %v150 = vsel %vm140, %v147, %v149
    %v151 = vsel %vm139, %v129, %v132
    %v152 = vsel %vm142, %v138, 1326507024
    %v153 = vsel %vm141, %v135, %v152
    %v154 = vsel %vm140, %v151, %v153
    %v155 = vshll.u32 %v115, 8
    %v156 = vmul.u32.u64.compose %v155, %v154
    %v157 = vextract.low.u32 %v156
    %v158 = vextract.high.u32 %v156
    %v159 = vmul.u32.u64.compose %v155, %v150
    %v160 = vextract.low.u32 %v159
    %v161 = vextract.high.u32 %v159
    %v162 = vmul.u32 %v155, %v146
    %v163 = vadd.s32 %v158, %v160
    %vm164 = vc.u32 %v158, %v160
    %v165 = vadd.s32 %v161, 1
    %v166 = vsel %vm164, %v165, %v161
    %v167 = vadd.s32 %v162, %v166
    %v168 = vadd.s32 %v167, 536870912
    %v169 = vshrl.u32 %v168, 30
    %v170 = vshll.u32 %v169, 30
    %v171 = vsub.s32 %v167, %v170
    %vm172 = vcmp.lt.s32.totalorder %v171, 0
    %v173 = vsub.s32 0, %v171
    %v174 = vsel %vm172, %v173, %v171
    %v175 = vclz %v174
    %v176 = vsub.s32 %v175, 2
    %vm177 = vcmp.gt.s32.totalorder 0, %v176
    %v178 = vsel %vm177, 0, %v176
    %v179 = vsub.s32 32, %v178
    %v180 = vshll.u32 %v171, %v178
    %v181 = vshrl.u32 %v163, %v179
    %v182 = vor.u32 %v180, %v181
    %v183 = vsub.s32 4294967266, %v178
    %v184 = vadd.s32 %v183, 127
    %v185 = vshll.u32 %v184, 23
    %v186 = vor.u32 4788187, %v185
    %v187 = vand.u32 2147483647, %v186
    %v189 = vcvt.s32.f32 %v182
    %v190 = vmul.f32 %v189, %v187
    %v191 = vxor.u32 %v190, 2147483648
    %v192 = vsel %vm109, %v191, %v190
    %v193 = vsub.s32 4, %v169
    %v194 = vsel %vm109, %v193, %v169
    %v195 = vsel %vm108, %v99, %v192
    %v196 = vsel %vm108, 0, %v194
    %v197 = vcosq.f32.pop %v195
    %v198 = vsinq.f32.pop %v195
    %vm199 = vweird.f32 %v99
    %v200 = vadd.s32 %v196, 3
    %v201 = vand.u32 %v200, 3
    %vm202 = vcmp.lt.s32.totalorder %v201, 2
    %vm203 = vcmp.eq.s32.totalorder %v201, 0
    %v204 = vxor.u32 %v198, 2147483648
    %v205 = vsel %vm203, %v197, %v204
    %vm206 = vcmp.eq.s32.totalorder %v201, 2
    %v207 = vxor.u32 %v197, 2147483648
    %v208 = vsel %vm206, %v207, %v198
    %v209 = vsel %vm202, %v205, %v208
    %v210 = vsel %vm199, nan, %v209
    %v211 = vand.u32 2147483647, %v100
    %vm212 = vcmp.le.f32.partialorder %v211, 0.7853982
    %vm213 = vcmp.lt.s32.totalorder %v100, 0
    %v214 = vand.u32 %v100, 2139095040
    %v215 = vshrl.u32 %v214, 23
    %v216 = vsub.s32 %v215, 127
    %v217 = vand.u32 2147483647, %v100
    %v218 = vand.u32 %v217, 8388607
    %v219 = vor.u32 %v218, 8388608
    %v220 = vsub.s32 0, %v219
    %v221 = vadd.s32 %v216, 1
    %vm222 = vcmp.gt.s32.totalorder %v221, 0
    %v223 = vsel %vm222, %v221, 0
    %v224 = vshrl.u32 %v223, 5
    %v225 = vand.u32 %v223, 31
    %v226 = vsub.s32 32, %v225
    %v227 = vshrl.u32 683565275, %v226
    %v228 = vshll.u32 683565275, %v225
    %v229 = vshrl.u32 2475754826, %v226
    %v230 = vor.u32 %v228, %v229
    %v231 = vshll.u32 2475754826, %v225
    %v232 = vshrl.u32 2131351028, %v226
    %v233 = vor.u32 %v231, %v232
    %v234 = vshll.u32 2131351028, %v225
    %v235 = vshrl.u32 2102212464, %v226
    %v236 = vor.u32 %v234, %v235
    %v237 = vshll.u32 2102212464, %v225
    %v238 = vshrl.u32 920167782, %v226
    %v239 = vor.u32 %v237, %v238
    %v240 = vshll.u32 920167782, %v225
    %v241 = vshrl.u32 1326507024, %v226
    %v242 = vor.u32 %v240, %v241
    %vm243 = vcmp.lt.s32.totalorder %v224, 1
    %vm244 = vcmp.lt.s32.totalorder %v224, 2
    %vm245 = vcmp.lt.s32.totalorder %v224, 3
    %vm246 = vcmp.lt.s32.totalorder %v224, 4
    %v247 = vsel %vm243, %v227, %v230
    %v248 = vsel %vm246, %v236, 2102212464
    %v249 = vsel %vm245, %v233, %v248
    %v250 = vsel %vm244, %v247, %v249
    %v251 = vsel %vm243, %v230, %v233
    %v252 = vsel %vm246, %v239, 920167782
    %v253 = vsel %vm245, %v236, %v252
    %v254 = vsel %vm244, %v251, %v253
    %v255 = vsel %vm243, %v233, %v236
    %v256 = vsel %vm246, %v242, 1326507024
    %v257 = vsel %vm245, %v239, %v256
    %v258 = vsel %vm244, %v255, %v257
    %v259 = vshll.u32 %v219, 8
    %v260 = vmul.u32.u64.compose %v259, %v258
    %v261 = vextract.low.u32 %v260
    %v262 = vextract.high.u32 %v260
    %v263 = vmul.u32.u64.compose %v259, %v254
    %v264 = vextract.low.u32 %v263
    %v265 = vextract.high.u32 %v263
    %v266 = vmul.u32 %v259, %v250
    %v267 = vadd.s32 %v262, %v264
    %vm268 = vc.u32 %v262, %v264
    %v269 = vadd.s32 %v265, 1
    %v270 = vsel %vm268, %v269, %v265
    %v271 = vadd.s32 %v266, %v270
    %v272 = vadd.s32 %v271, 536870912
    %v273 = vshrl.u32 %v272, 30
    %v274 = vshll.u32 %v273, 30
    %v275 = vsub.s32 %v271, %v274
    %vm276 = vcmp.lt.s32.totalorder %v275, 0
    %v277 = vsub.s32 0, %v275
    %v278 = vsel %vm276, %v277, %v275
    %v279 = vclz %v278
    %v280 = vsub.s32 %v279, 2
    %vm281 = vcmp.gt.s32.totalorder 0, %v280
    %v282 = vsel %vm281, 0, %v280
    %v283 = vsub.s32 32, %v282
    %v284 = vshll.u32 %v275, %v282
    %v285 = vshrl.u32 %v267, %v283
    %v286 = vor.u32 %v284, %v285
    %v287 = vsub.s32 4294967266, %v282
    %v288 = vadd.s32 %v287, 127
    %v289 = vshll.u32 %v288, 23
    %v290 = vor.u32 4788187, %v289
    %v291 = vand.u32 2147483647, %v290
    %v293 = vcvt.s32.f32 %v286
    %v294 = vmul.f32 %v293, %v291
    %v295 = vxor.u32 %v294, 2147483648
    %v296 = vsel %vm213, %v295, %v294
    %v297 = vsub.s32 4, %v273
    %v298 = vsel %vm213, %v297, %v273
    %v299 = vsel %vm212, %v100, %v296
    %v300 = vsel %vm212, 0, %v298
    %v301 = vcosq.f32.pop %v299
    %v302 = vsinq.f32.pop %v299
    %vm303 = vweird.f32 %v100
    %v304 = vadd.s32 %v300, 3
    %v305 = vand.u32 %v304, 3
    %vm306 = vcmp.lt.s32.totalorder %v305, 2
    %vm307 = vcmp.eq.s32.totalorder %v305, 0
    %v308 = vxor.u32 %v302, 2147483648
    %v309 = vsel %vm307, %v301, %v308
    %vm310 = vcmp.eq.s32.totalorder %v305, 2
    %v311 = vxor.u32 %v301, 2147483648
    %v312 = vsel %vm310, %v311, %v302
    %v313 = vsel %vm306, %v309, %v312
    %v314 = vsel %vm303, nan, %v313
    %v315 = vand.u32 2147483647, %v101
    %vm316 = vcmp.le.f32.partialorder %v315, 0.7853982
    %vm317 = vcmp.lt.s32.totalorder %v101, 0
    %v318 = vand.u32 %v101, 2139095040
    %v319 = vshrl.u32 %v318, 23
    %v320 = vsub.s32 %v319, 127
    %v321 = vand.u32 2147483647, %v101
    %v322 = vand.u32 %v321, 8388607
    %v323 = vor.u32 %v322, 8388608
    %v324 = vsub.s32 0, %v323
    %v325 = vadd.s32 %v320, 1
    %vm326 = vcmp.gt.s32.totalorder %v325, 0
    %v327 = vsel %vm326, %v325, 0
    %v328 = vshrl.u32 %v327, 5
    %v329 = vand.u32 %v327, 31
    %v330 = vsub.s32 32, %v329
    %v331 = vshrl.u32 683565275, %v330
    %v332 = vshll.u32 683565275, %v329
    %v333 = vshrl.u32 2475754826, %v330
    %v334 = vor.u32 %v332, %v333
    %v335 = vshll.u32 2475754826, %v329
    %v336 = vshrl.u32 2131351028, %v330
    %v337 = vor.u32 %v335, %v336
    %v338 = vshll.u32 2131351028, %v329
    %v339 = vshrl.u32 2102212464, %v330
    %v340 = vor.u32 %v338, %v339
    %v341 = vshll.u32 2102212464, %v329
    %v342 = vshrl.u32 920167782, %v330
    %v343 = vor.u32 %v341, %v342
    %v344 = vshll.u32 920167782, %v329
    %v345 = vshrl.u32 1326507024, %v330
    %v346 = vor.u32 %v344, %v345
    %vm347 = vcmp.lt.s32.totalorder %v328, 1
    %vm348 = vcmp.lt.s32.totalorder %v328, 2
    %vm349 = vcmp.lt.s32.totalorder %v328, 3
    %vm350 = vcmp.lt.s32.totalorder %v328, 4
    %v351 = vsel %vm347, %v331, %v334
    %v352 = vsel %vm350, %v340, 2102212464
    %v353 = vsel %vm349, %v337, %v352
    %v354 = vsel %vm348, %v351, %v353
    %v355 = vsel %vm347, %v334, %v337
    %v356 = vsel %vm350, %v343, 920167782
    %v357 = vsel %vm349, %v340, %v356
    %v358 = vsel %vm348, %v355, %v357
    %v359 = vsel %vm347, %v337, %v340
    %v360 = vsel %vm350, %v346, 1326507024
    %v361 = vsel %vm349, %v343, %v360
    %v362 = vsel %vm348, %v359, %v361
    %v363 = vshll.u32 %v323, 8
    %v364 = vmul.u32.u64.compose %v363, %v362
    %v365 = vextract.low.u32 %v364
    %v366 = vextract.high.u32 %v364
    %v367 = vmul.u32.u64.compose %v363, %v358
    %v368 = vextract.low.u32 %v367
    %v369 = vextract.high.u32 %v367
    %v370 = vmul.u32 %v363, %v354
    %v371 = vadd.s32 %v366, %v368
    %vm372 = vc.u32 %v366, %v368
    %v373 = vadd.s32 %v369, 1
    %v374 = vsel %vm372, %v373, %v369
    %v375 = vadd.s32 %v370, %v374
    %v376 = vadd.s32 %v375, 536870912
    %v377 = vshrl.u32 %v376, 30
    %v378 = vshll.u32 %v377, 30
    %v379 = vsub.s32 %v375, %v378
    %vm380 = vcmp.lt.s32.totalorder %v379, 0
    %v381 = vsub.s32 0, %v379
    %v382 = vsel %vm380, %v381, %v379
    %v383 = vclz %v382
    %v384 = vsub.s32 %v383, 2
    %vm385 = vcmp.gt.s32.totalorder 0, %v384
    %v386 = vsel %vm385, 0, %v384
    %v387 = vsub.s32 32, %v386
    %v388 = vshll.u32 %v379, %v386
    %v389 = vshrl.u32 %v371, %v387
    %v390 = vor.u32 %v388, %v389
    %v391 = vsub.s32 4294967266, %v386
    %v392 = vadd.s32 %v391, 127
    %v393 = vshll.u32 %v392, 23
    %v394 = vor.u32 4788187, %v393
    %v395 = vand.u32 2147483647, %v394
    %v397 = vcvt.s32.f32 %v390
    %v398 = vmul.f32 %v397, %v395
    %v399 = vxor.u32 %v398, 2147483648
    %v400 = vsel %vm317, %v399, %v398
    %v401 = vsub.s32 4, %v377
    %v402 = vsel %vm317, %v401, %v377
    %v403 = vsel %vm316, %v101, %v400
    %v404 = vsel %vm316, 0, %v402
    %v405 = vcosq.f32.pop %v403
    %v406 = vsinq.f32.pop %v403
    %vm407 = vweird.f32 %v101
    %v408 = vadd.s32 %v404, 3
    %v409 = vand.u32 %v408, 3
    %vm410 = vcmp.lt.s32.totalorder %v409, 2
    %vm411 = vcmp.eq.s32.totalorder %v409, 0
    %v412 = vxor.u32 %v406, 2147483648
    %v413 = vsel %vm411, %v405, %v412
    %vm414 = vcmp.eq.s32.totalorder %v409, 2
    %v415 = vxor.u32 %v405, 2147483648
    %v416 = vsel %vm414, %v415, %v406
    %v417 = vsel %vm410, %v413, %v416
    %v418 = vsel %vm407, nan, %v417
    %v419 = vand.u32 2147483647, %v102
    %vm420 = vcmp.le.f32.partialorder %v419, 0.7853982
    %vm421 = vcmp.lt.s32.totalorder %v102, 0
    %v422 = vand.u32 %v102, 2139095040
    %v423 = vshrl.u32 %v422, 23
    %v424 = vsub.s32 %v423, 127
    %v425 = vand.u32 2147483647, %v102
    %v426 = vand.u32 %v425, 8388607
    %v427 = vor.u32 %v426, 8388608
    %v428 = vsub.s32 0, %v427
    %v429 = vadd.s32 %v424, 1
    %vm430 = vcmp.gt.s32.totalorder %v429, 0
    %v431 = vsel %vm430, %v429, 0
    %v432 = vshrl.u32 %v431, 5
    %v433 = vand.u32 %v431, 31
    %v434 = vsub.s32 32, %v433
    %v435 = vshrl.u32 683565275, %v434
    %v436 = vshll.u32 683565275, %v433
    %v437 = vshrl.u32 2475754826, %v434
    %v438 = vor.u32 %v436, %v437
    %v439 = vshll.u32 2475754826, %v433
    %v440 = vshrl.u32 2131351028, %v434
    %v441 = vor.u32 %v439, %v440
    %v442 = vshll.u32 2131351028, %v433
    %v443 = vshrl.u32 2102212464, %v434
    %v444 = vor.u32 %v442, %v443
    %v445 = vshll.u32 2102212464, %v433
    %v446 = vshrl.u32 920167782, %v434
    %v447 = vor.u32 %v445, %v446
    %v448 = vshll.u32 920167782, %v433
    %v449 = vshrl.u32 1326507024, %v434
    %v450 = vor.u32 %v448, %v449
    %vm451 = vcmp.lt.s32.totalorder %v432, 1
    %vm452 = vcmp.lt.s32.totalorder %v432, 2
    %vm453 = vcmp.lt.s32.totalorder %v432, 3
    %vm454 = vcmp.lt.s32.totalorder %v432, 4
    %v455 = vsel %vm451, %v435, %v438
    %v456 = vsel %vm454, %v444, 2102212464
    %v457 = vsel %vm453, %v441, %v456
    %v458 = vsel %vm452, %v455, %v457
    %v459 = vsel %vm451, %v438, %v441
    %v460 = vsel %vm454, %v447, 920167782
    %v461 = vsel %vm453, %v444, %v460
    %v462 = vsel %vm452, %v459, %v461
    %v463 = vsel %vm451, %v441, %v444
    %v464 = vsel %vm454, %v450, 1326507024
    %v465 = vsel %vm453, %v447, %v464
    %v466 = vsel %vm452, %v463, %v465
    %v467 = vshll.u32 %v427, 8
    %v468 = vmul.u32.u64.compose %v467, %v466
    %v469 = vextract.low.u32 %v468
    %v470 = vextract.high.u32 %v468
    %v471 = vmul.u32.u64.compose %v467, %v462
    %v472 = vextract.low.u32 %v471
    %v473 = vextract.high.u32 %v471
    %v474 = vmul.u32 %v467, %v458
    %v475 = vadd.s32 %v470, %v472
    %vm476 = vc.u32 %v470, %v472
    %v477 = vadd.s32 %v473, 1
    %v478 = vsel %vm476, %v477, %v473
    %v479 = vadd.s32 %v474, %v478
    %v480 = vadd.s32 %v479, 536870912
    %v481 = vshrl.u32 %v480, 30
    %v482 = vshll.u32 %v481, 30
    %v483 = vsub.s32 %v479, %v482
    %vm484 = vcmp.lt.s32.totalorder %v483, 0
    %v485 = vsub.s32 0, %v483
    %v486 = vsel %vm484, %v485, %v483
    %v487 = vclz %v486
    %v488 = vsub.s32 %v487, 2
    %vm489 = vcmp.gt.s32.totalorder 0, %v488
    %v490 = vsel %vm489, 0, %v488
    %v491 = vsub.s32 32, %v490
    %v492 = vshll.u32 %v483, %v490
    %v493 = vshrl.u32 %v475, %v491
    %v494 = vor.u32 %v492, %v493
    %v495 = vsub.s32 4294967266, %v490
    %v496 = vadd.s32 %v495, 127
    %v497 = vshll.u32 %v496, 23
    %v498 = vor.u32 4788187, %v497
    %v499 = vand.u32 2147483647, %v498
    %v501 = vcvt.s32.f32 %v494
    %v502 = vmul.f32 %v501, %v499
    %v503 = vxor.u32 %v502, 2147483648
    %v504 = vsel %vm421, %v503, %v502
    %v505 = vsub.s32 4, %v481
    %v506 = vsel %vm421, %v505, %v481
    %v507 = vsel %vm420, %v102, %v504
    %v508 = vsel %vm420, 0, %v506
    %v509 = vcosq.f32.pop %v507
    %v510 = vsinq.f32.pop %v507
    %vm511 = vweird.f32 %v102
    %v512 = vadd.s32 %v508, 3
    %v513 = vand.u32 %v512, 3
    %vm514 = vcmp.lt.s32.totalorder %v513, 2
    %vm515 = vcmp.eq.s32.totalorder %v513, 0
    %v516 = vxor.u32 %v510, 2147483648
    %v517 = vsel %vm515, %v509, %v516
    %vm518 = vcmp.eq.s32.totalorder %v513, 2
    %v519 = vxor.u32 %v509, 2147483648
    %v520 = vsel %vm518, %v519, %v510
    %v521 = vsel %vm514, %v517, %v520
    %v522 = vsel %vm511, nan, %v521
    %v523 = vand.u32 2147483647, %v103
    %vm524 = vcmp.le.f32.partialorder %v523, 0.7853982
    %vm525 = vcmp.lt.s32.totalorder %v103, 0
    %v526 = vand.u32 %v103, 2139095040
    %v527 = vshrl.u32 %v526, 23
    %v528 = vsub.s32 %v527, 127
    %v529 = vand.u32 2147483647, %v103
    %v530 = vand.u32 %v529, 8388607
    %v531 = vor.u32 %v530, 8388608
    %v532 = vsub.s32 0, %v531
    %v533 = vadd.s32 %v528, 1
    %vm534 = vcmp.gt.s32.totalorder %v533, 0
    %v535 = vsel %vm534, %v533, 0
    %v536 = vshrl.u32 %v535, 5
    %v537 = vand.u32 %v535, 31
    %v538 = vsub.s32 32, %v537
    %v539 = vshrl.u32 683565275, %v538
    %v540 = vshll.u32 683565275, %v537
    %v541 = vshrl.u32 2475754826, %v538
    %v542 = vor.u32 %v540, %v541
    %v543 = vshll.u32 2475754826, %v537
    %v544 = vshrl.u32 2131351028, %v538
    %v545 = vor.u32 %v543, %v544
    %v546 = vshll.u32 2131351028, %v537
    %v547 = vshrl.u32 2102212464, %v538
    %v548 = vor.u32 %v546, %v547
    %v549 = vshll.u32 2102212464, %v537
    %v550 = vshrl.u32 920167782, %v538
    %v551 = vor.u32 %v549, %v550
    %v552 = vshll.u32 920167782, %v537
    %v553 = vshrl.u32 1326507024, %v538
    %v554 = vor.u32 %v552, %v553
    %vm555 = vcmp.lt.s32.totalorder %v536, 1
    %vm556 = vcmp.lt.s32.totalorder %v536, 2
    %vm557 = vcmp.lt.s32.totalorder %v536, 3
    %vm558 = vcmp.lt.s32.totalorder %v536, 4
    %v559 = vsel %vm555, %v539, %v542
    %v560 = vsel %vm558, %v548, 2102212464
    %v561 = vsel %vm557, %v545, %v560
    %v562 = vsel %vm556, %v559, %v561
    %v563 = vsel %vm555, %v542, %v545
    %v564 = vsel %vm558, %v551, 920167782
    %v565 = vsel %vm557, %v548, %v564
    %v566 = vsel %vm556, %v563, %v565
    %v567 = vsel %vm555, %v545, %v548
    %v568 = vsel %vm558, %v554, 1326507024
    %v569 = vsel %vm557, %v551, %v568
    %v570 = vsel %vm556, %v567, %v569
    %v571 = vshll.u32 %v531, 8
    %v572 = vmul.u32.u64.compose %v571, %v570
    %v573 = vextract.low.u32 %v572
    %v574 = vextract.high.u32 %v572
    %v575 = vmul.u32.u64.compose %v571, %v566
    %v576 = vextract.low.u32 %v575
    %v577 = vextract.high.u32 %v575
    %v578 = vmul.u32 %v571, %v562
    %v579 = vadd.s32 %v574, %v576
    %vm580 = vc.u32 %v574, %v576
    %v581 = vadd.s32 %v577, 1
    %v582 = vsel %vm580, %v581, %v577
    %v583 = vadd.s32 %v578, %v582
    %v584 = vadd.s32 %v583, 536870912
    %v585 = vshrl.u32 %v584, 30
    %v586 = vshll.u32 %v585, 30
    %v587 = vsub.s32 %v583, %v586
    %vm588 = vcmp.lt.s32.totalorder %v587, 0
    %v589 = vsub.s32 0, %v587
    %v590 = vsel %vm588, %v589, %v587
    %v591 = vclz %v590
    %v592 = vsub.s32 %v591, 2
    %vm593 = vcmp.gt.s32.totalorder 0, %v592
    %v594 = vsel %vm593, 0, %v592
    %v595 = vsub.s32 32, %v594
    %v596 = vshll.u32 %v587, %v594
    %v597 = vshrl.u32 %v579, %v595
    %v598 = vor.u32 %v596, %v597
    %v599 = vsub.s32 4294967266, %v594
    %v600 = vadd.s32 %v599, 127
    %v601 = vshll.u32 %v600, 23
    %v602 = vor.u32 4788187, %v601
    %v603 = vand.u32 2147483647, %v602
    %v605 = vcvt.s32.f32 %v598
    %v606 = vmul.f32 %v605, %v603
    %v607 = vxor.u32 %v606, 2147483648
    %v608 = vsel %vm525, %v607, %v606
    %v609 = vsub.s32 4, %v585
    %v610 = vsel %vm525, %v609, %v585
    %v611 = vsel %vm524, %v103, %v608
    %v612 = vsel %vm524, 0, %v610
    %v613 = vcosq.f32.pop %v611
    %v614 = vsinq.f32.pop %v611
    %vm615 = vweird.f32 %v103
    %v616 = vadd.s32 %v612, 3
    %v617 = vand.u32 %v616, 3
    %vm618 = vcmp.lt.s32.totalorder %v617, 2
    %vm619 = vcmp.eq.s32.totalorder %v617, 0
    %v620 = vxor.u32 %v614, 2147483648
    %v621 = vsel %vm619, %v613, %v620
    %vm622 = vcmp.eq.s32.totalorder %v617, 2
    %v623 = vxor.u32 %v613, 2147483648
    %v624 = vsel %vm622, %v623, %v614
    %v625 = vsel %vm618, %v621, %v624
    %v626 = vsel %vm615, nan, %v625
    %v627 = vand.u32 2147483647, %v104
    %vm628 = vcmp.le.f32.partialorder %v627, 0.7853982
    %vm629 = vcmp.lt.s32.totalorder %v104, 0
    %v630 = vand.u32 %v104, 2139095040
    %v631 = vshrl.u32 %v630, 23
    %v632 = vsub.s32 %v631, 127
    %v633 = vand.u32 2147483647, %v104
    %v634 = vand.u32 %v633, 8388607
    %v635 = vor.u32 %v634, 8388608
    %v636 = vsub.s32 0, %v635
    %v637 = vadd.s32 %v632, 1
    %vm638 = vcmp.gt.s32.totalorder %v637, 0
    %v639 = vsel %vm638, %v637, 0
    %v640 = vshrl.u32 %v639, 5
    %v641 = vand.u32 %v639, 31
    %v642 = vsub.s32 32, %v641
    %v643 = vshrl.u32 683565275, %v642
    %v644 = vshll.u32 683565275, %v641
    %v645 = vshrl.u32 2475754826, %v642
    %v646 = vor.u32 %v644, %v645
    %v647 = vshll.u32 2475754826, %v641
    %v648 = vshrl.u32 2131351028, %v642
    %v649 = vor.u32 %v647, %v648
    %v650 = vshll.u32 2131351028, %v641
    %v651 = vshrl.u32 2102212464, %v642
    %v652 = vor.u32 %v650, %v651
    %v653 = vshll.u32 2102212464, %v641
    %v654 = vshrl.u32 920167782, %v642
    %v655 = vor.u32 %v653, %v654
    %v656 = vshll.u32 920167782, %v641
    %v657 = vshrl.u32 1326507024, %v642
    %v658 = vor.u32 %v656, %v657
    %vm659 = vcmp.lt.s32.totalorder %v640, 1
    %vm660 = vcmp.lt.s32.totalorder %v640, 2
    %vm661 = vcmp.lt.s32.totalorder %v640, 3
    %vm662 = vcmp.lt.s32.totalorder %v640, 4
    %v663 = vsel %vm659, %v643, %v646
    %v664 = vsel %vm662, %v652, 2102212464
    %v665 = vsel %vm661, %v649, %v664
    %v666 = vsel %vm660, %v663, %v665
    %v667 = vsel %vm659, %v646, %v649
    %v668 = vsel %vm662, %v655, 920167782
    %v669 = vsel %vm661, %v652, %v668
    %v670 = vsel %vm660, %v667, %v669
    %v671 = vsel %vm659, %v649, %v652
    %v672 = vsel %vm662, %v658, 1326507024
    %v673 = vsel %vm661, %v655, %v672
    %v674 = vsel %vm660, %v671, %v673
    %v675 = vshll.u32 %v635, 8
    %v676 = vmul.u32.u64.compose %v675, %v674
    %v677 = vextract.low.u32 %v676
    %v678 = vextract.high.u32 %v676
    %v679 = vmul.u32.u64.compose %v675, %v670
    %v680 = vextract.low.u32 %v679
    %v681 = vextract.high.u32 %v679
    %v682 = vmul.u32 %v675, %v666
    %v683 = vadd.s32 %v678, %v680
    %vm684 = vc.u32 %v678, %v680
    %v685 = vadd.s32 %v681, 1
    %v686 = vsel %vm684, %v685, %v681
    %v687 = vadd.s32 %v682, %v686
    %v688 = vadd.s32 %v687, 536870912
    %v689 = vshrl.u32 %v688, 30
    %v690 = vshll.u32 %v689, 30
    %v691 = vsub.s32 %v687, %v690
    %vm692 = vcmp.lt.s32.totalorder %v691, 0
    %v693 = vsub.s32 0, %v691
    %v694 = vsel %vm692, %v693, %v691
    %v695 = vclz %v694
    %v696 = vsub.s32 %v695, 2
    %vm697 = vcmp.gt.s32.totalorder 0, %v696
    %v698 = vsel %vm697, 0, %v696
    %v699 = vsub.s32 32, %v698
    %v700 = vshll.u32 %v691, %v698
    %v701 = vshrl.u32 %v683, %v699
    %v702 = vor.u32 %v700, %v701
    %v703 = vsub.s32 4294967266, %v698
    %v704 = vadd.s32 %v703, 127
    %v705 = vshll.u32 %v704, 23
    %v706 = vor.u32 4788187, %v705
    %v707 = vand.u32 2147483647, %v706
    %v709 = vcvt.s32.f32 %v702
    %v710 = vmul.f32 %v709, %v707
    %v711 = vxor.u32 %v710, 2147483648
    %v712 = vsel %vm629, %v711, %v710
    %v713 = vsub.s32 4, %v689
    %v714 = vsel %vm629, %v713, %v689
    %v715 = vsel %vm628, %v104, %v712
    %v716 = vsel %vm628, 0, %v714
    %v717 = vcosq.f32.pop %v715
    %v718 = vsinq.f32.pop %v715
    %vm719 = vweird.f32 %v104
    %v720 = vadd.s32 %v716, 3
    %v721 = vand.u32 %v720, 3
    %vm722 = vcmp.lt.s32.totalorder %v721, 2
    %vm723 = vcmp.eq.s32.totalorder %v721, 0
    %v724 = vxor.u32 %v718, 2147483648
    %v725 = vsel %vm723, %v717, %v724
    %vm726 = vcmp.eq.s32.totalorder %v721, 2
    %v727 = vxor.u32 %v717, 2147483648
    %v728 = vsel %vm726, %v727, %v718
    %v729 = vsel %vm722, %v725, %v728
    %v730 = vsel %vm719, nan, %v729
    %v731 = vand.u32 2147483647, %v105
    %vm732 = vcmp.le.f32.partialorder %v731, 0.7853982
    %vm733 = vcmp.lt.s32.totalorder %v105, 0
    %v734 = vand.u32 %v105, 2139095040
    %v735 = vshrl.u32 %v734, 23
    %v736 = vsub.s32 %v735, 127
    %v737 = vand.u32 2147483647, %v105
    %v738 = vand.u32 %v737, 8388607
    %v739 = vor.u32 %v738, 8388608
    %v740 = vsub.s32 0, %v739
    %v741 = vadd.s32 %v736, 1
    %vm742 = vcmp.gt.s32.totalorder %v741, 0
    %v743 = vsel %vm742, %v741, 0
    %v744 = vshrl.u32 %v743, 5
    %v745 = vand.u32 %v743, 31
    %v746 = vsub.s32 32, %v745
    %v747 = vshrl.u32 683565275, %v746
    %v748 = vshll.u32 683565275, %v745
    %v749 = vshrl.u32 2475754826, %v746
    %v750 = vor.u32 %v748, %v749
    %v751 = vshll.u32 2475754826, %v745
    %v752 = vshrl.u32 2131351028, %v746
    %v753 = vor.u32 %v751, %v752
    %v754 = vshll.u32 2131351028, %v745
    %v755 = vshrl.u32 2102212464, %v746
    %v756 = vor.u32 %v754, %v755
    %v757 = vshll.u32 2102212464, %v745
    %v758 = vshrl.u32 920167782, %v746
    %v759 = vor.u32 %v757, %v758
    %v760 = vshll.u32 920167782, %v745
    %v761 = vshrl.u32 1326507024, %v746
    %v762 = vor.u32 %v760, %v761
    %vm763 = vcmp.lt.s32.totalorder %v744, 1
    %vm764 = vcmp.lt.s32.totalorder %v744, 2
    %vm765 = vcmp.lt.s32.totalorder %v744, 3
    %vm766 = vcmp.lt.s32.totalorder %v744, 4
    %v767 = vsel %vm763, %v747, %v750
    %v768 = vsel %vm766, %v756, 2102212464
    %v769 = vsel %vm765, %v753, %v768
    %v770 = vsel %vm764, %v767, %v769
    %v771 = vsel %vm763, %v750, %v753
    %v772 = vsel %vm766, %v759, 920167782
    %v773 = vsel %vm765, %v756, %v772
    %v774 = vsel %vm764, %v771, %v773
    %v775 = vsel %vm763, %v753, %v756
    %v776 = vsel %vm766, %v762, 1326507024
    %v777 = vsel %vm765, %v759, %v776
    %v778 = vsel %vm764, %v775, %v777
    %v779 = vshll.u32 %v739, 8
    %v780 = vmul.u32.u64.compose %v779, %v778
    %v781 = vextract.low.u32 %v780
    %v782 = vextract.high.u32 %v780
    %v783 = vmul.u32.u64.compose %v779, %v774
    %v784 = vextract.low.u32 %v783
    %v785 = vextract.high.u32 %v783
    %v786 = vmul.u32 %v779, %v770
    %v787 = vadd.s32 %v782, %v784
    %vm788 = vc.u32 %v782, %v784
    %v789 = vadd.s32 %v785, 1
    %v790 = vsel %vm788, %v789, %v785
    %v791 = vadd.s32 %v786, %v790
    %v792 = vadd.s32 %v791, 536870912
    %v793 = vshrl.u32 %v792, 30
    %v794 = vshll.u32 %v793, 30
    %v795 = vsub.s32 %v791, %v794
    %vm796 = vcmp.lt.s32.totalorder %v795, 0
    %v797 = vsub.s32 0, %v795
    %v798 = vsel %vm796, %v797, %v795
    %v799 = vclz %v798
    %v800 = vsub.s32 %v799, 2
    %vm801 = vcmp.gt.s32.totalorder 0, %v800
    %v802 = vsel %vm801, 0, %v800
    %v803 = vsub.s32 32, %v802
    %v804 = vshll.u32 %v795, %v802
    %v805 = vshrl.u32 %v787, %v803
    %v806 = vor.u32 %v804, %v805
    %v807 = vsub.s32 4294967266, %v802
    %v808 = vadd.s32 %v807, 127
    %v809 = vshll.u32 %v808, 23
    %v810 = vor.u32 4788187, %v809
    %v811 = vand.u32 2147483647, %v810
    %v813 = vcvt.s32.f32 %v806
    %v814 = vmul.f32 %v813, %v811
    %v815 = vxor.u32 %v814, 2147483648
    %v816 = vsel %vm733, %v815, %v814
    %v817 = vsub.s32 4, %v793
    %v818 = vsel %vm733, %v817, %v793
    %v819 = vsel %vm732, %v105, %v816
    %v820 = vsel %vm732, 0, %v818
    %v821 = vcosq.f32.pop %v819
    %v822 = vsinq.f32.pop %v819
    %vm823 = vweird.f32 %v105
    %v824 = vadd.s32 %v820, 3
    %v825 = vand.u32 %v824, 3
    %vm826 = vcmp.lt.s32.totalorder %v825, 2
    %vm827 = vcmp.eq.s32.totalorder %v825, 0
    %v828 = vxor.u32 %v822, 2147483648
    %v829 = vsel %vm827, %v821, %v828
    %vm830 = vcmp.eq.s32.totalorder %v825, 2
    %v831 = vxor.u32 %v821, 2147483648
    %v832 = vsel %vm830, %v831, %v822
    %v833 = vsel %vm826, %v829, %v832
    %v834 = vsel %vm823, nan, %v833
    %v835 = vand.u32 2147483647, %v106
    %vm836 = vcmp.le.f32.partialorder %v835, 0.7853982
    %vm837 = vcmp.lt.s32.totalorder %v106, 0
    %v838 = vand.u32 %v106, 2139095040
    %v839 = vshrl.u32 %v838, 23
    %v840 = vsub.s32 %v839, 127
    %v841 = vand.u32 2147483647, %v106
    %v842 = vand.u32 %v841, 8388607
    %v843 = vor.u32 %v842, 8388608
    %v844 = vsub.s32 0, %v843
    %v845 = vadd.s32 %v840, 1
    %vm846 = vcmp.gt.s32.totalorder %v845, 0
    %v847 = vsel %vm846, %v845, 0
    %v848 = vshrl.u32 %v847, 5
    %v849 = vand.u32 %v847, 31
    %v850 = vsub.s32 32, %v849
    %v851 = vshrl.u32 683565275, %v850
    %v852 = vshll.u32 683565275, %v849
    %v853 = vshrl.u32 2475754826, %v850
    %v854 = vor.u32 %v852, %v853
    %v855 = vshll.u32 2475754826, %v849
    %v856 = vshrl.u32 2131351028, %v850
    %v857 = vor.u32 %v855, %v856
    %v858 = vshll.u32 2131351028, %v849
    %v859 = vshrl.u32 2102212464, %v850
    %v860 = vor.u32 %v858, %v859
    %v861 = vshll.u32 2102212464, %v849
    %v862 = vshrl.u32 920167782, %v850
    %v863 = vor.u32 %v861, %v862
    %v864 = vshll.u32 920167782, %v849
    %v865 = vshrl.u32 1326507024, %v850
    %v866 = vor.u32 %v864, %v865
    %vm867 = vcmp.lt.s32.totalorder %v848, 1
    %vm868 = vcmp.lt.s32.totalorder %v848, 2
    %vm869 = vcmp.lt.s32.totalorder %v848, 3
    %vm870 = vcmp.lt.s32.totalorder %v848, 4
    %v871 = vsel %vm867, %v851, %v854
    %v872 = vsel %vm870, %v860, 2102212464
    %v873 = vsel %vm869, %v857, %v872
    %v874 = vsel %vm868, %v871, %v873
    %v875 = vsel %vm867, %v854, %v857
    %v876 = vsel %vm870, %v863, 920167782
    %v877 = vsel %vm869, %v860, %v876
    %v878 = vsel %vm868, %v875, %v877
    %v879 = vsel %vm867, %v857, %v860
    %v880 = vsel %vm870, %v866, 1326507024
    %v881 = vsel %vm869, %v863, %v880
    %v882 = vsel %vm868, %v879, %v881
    %v883 = vshll.u32 %v843, 8
    %v884 = vmul.u32.u64.compose %v883, %v882
    %v885 = vextract.low.u32 %v884
    %v886 = vextract.high.u32 %v884
    %v887 = vmul.u32.u64.compose %v883, %v878
    %v888 = vextract.low.u32 %v887
    %v889 = vextract.high.u32 %v887
    %v890 = vmul.u32 %v883, %v874
    %v891 = vadd.s32 %v886, %v888
    %vm892 = vc.u32 %v886, %v888
    %v893 = vadd.s32 %v889, 1
    %v894 = vsel %vm892, %v893, %v889
    %v895 = vadd.s32 %v890, %v894
    %v896 = vadd.s32 %v895, 536870912
    %v897 = vshrl.u32 %v896, 30
    %v898 = vshll.u32 %v897, 30
    %v899 = vsub.s32 %v895, %v898
    %vm900 = vcmp.lt.s32.totalorder %v899, 0
    %v901 = vsub.s32 0, %v899
    %v902 = vsel %vm900, %v901, %v899
    %v903 = vclz %v902
    %v904 = vsub.s32 %v903, 2
    %vm905 = vcmp.gt.s32.totalorder 0, %v904
    %v906 = vsel %vm905, 0, %v904
    %v907 = vsub.s32 32, %v906
    %v908 = vshll.u32 %v899, %v906
    %v909 = vshrl.u32 %v891, %v907
    %v910 = vor.u32 %v908, %v909
    %v911 = vsub.s32 4294967266, %v906
    %v912 = vadd.s32 %v911, 127
    %v913 = vshll.u32 %v912, 23
    %v914 = vor.u32 4788187, %v913
    %v915 = vand.u32 2147483647, %v914
    %v917 = vcvt.s32.f32 %v910
    %v918 = vmul.f32 %v917, %v915
    %v919 = vxor.u32 %v918, 2147483648
    %v920 = vsel %vm837, %v919, %v918
    %v921 = vsub.s32 4, %v897
    %v922 = vsel %vm837, %v921, %v897
    %v923 = vsel %vm836, %v106, %v920
    %v924 = vsel %vm836, 0, %v922
    %v925 = vcosq.f32.pop %v923
    %v926 = vsinq.f32.pop %v923
    %vm927 = vweird.f32 %v106
    %v928 = vadd.s32 %v924, 3
    %v929 = vand.u32 %v928, 3
    %vm930 = vcmp.lt.s32.totalorder %v929, 2
    %vm931 = vcmp.eq.s32.totalorder %v929, 0
    %v932 = vxor.u32 %v926, 2147483648
    %v933 = vsel %vm931, %v925, %v932
    %vm934 = vcmp.eq.s32.totalorder %v929, 2
    %v935 = vxor.u32 %v925, 2147483648
    %v936 = vsel %vm934, %v935, %v926
    %v937 = vsel %vm930, %v933, %v936
    %v938 = vsel %vm927, nan, %v937
    %939 = vst [vmem:[#allocation8] sm:$0xff] %v210
    %940 = vst [vmem:[#allocation8 + $0x8] sm:$0xff] %v314
    %941 = vst [vmem:[#allocation8 + $0x10] sm:$0xff] %v418
    %942 = vst [vmem:[#allocation8 + $0x18] sm:$0xff] %v522
    %943 = vst [vmem:[#allocation8 + $0x20] sm:$0xff] %v626
    %944 = vst [vmem:[#allocation8 + $0x28] sm:$0xff] %v730
    %945 = vst [vmem:[#allocation8 + $0x30] sm:$0xff] %v834
    %946 = vst [vmem:[#allocation8 + $0x38] sm:$0xff] %v938
    // Predicated region
    $region26: #{tpu_custom_call.1} parent=1 // pred_check
      _
    $region27: #{tpu_custom_call.1} parent=1 // pred_check_branch
      %948 = sbr.rel (0) target = $region29
    $region28: #{tpu_custom_call.1} parent=1 // pred_region
      %s950 = ssub.s32 1024, 1024
      %951 = vsyncadd [#allocation4], %s950
      %s952 = sshll.u32 [#allocation8], 4
      %s953 = int_to_ptr.vmem [resolvable:$true] %s952
      %958 = dma.vmem_to_hbm [thread:$0]  %s953, 1024, %s3, [#allocation4], 128, 128, 8
    $region29: #{tpu_custom_call.1} parent=1 // pred_fallthru
      _
    // Predicated region
    $region30: #{tpu_custom_call.1} parent=1 // pred_check
      _
    $region31: #{tpu_custom_call.1} parent=1 // pred_check_branch
      %960 = sbr.rel (0) target = $region33
    $region32: #{tpu_custom_call.1} parent=1 // pred_region
      %961 = dma.done [#allocation4], 1024
    $region33: #{tpu_custom_call.1} parent=1 // pred_fallthru
      _
    %962 = vsyncpa [#allocation3], 1
    %963 = vsyncpa [#allocation6], 1
    %964 = vsyncpa [#allocation4], 1

</llo_original>
